<compile_context>
chip_gen: v7x
topology: tpu7x:2x2x1
jax: 0.10.0
libtpu: 0.0.40
codegen_flags: <defaults>
</compile_context>

<pallas_src>
import jax
import jax.numpy as jnp
from jax.experimental import pallas as pl
from jax.experimental.pallas import tpu as pltpu


def _br_kernel(x_ref, p_ref, o_ref):
    """x_ref/o_ref: (R, TW) tile of the (N*C, H*W) view.
    p_ref: (R, 3) per-row parameters packed as [scale, shift, alpha]."""
    x = x_ref[...].astype(jnp.float32)        # (R, TW)
    p = p_ref[...]                            # (R, 3), f32
    scale = p[:, 0:1]                         # (R, 1) -> lane broadcast
    shift = p[:, 1:2]
    alpha = p[:, 2:3]
    y = x * scale + shift                     # folded BN: one fma
    y = jnp.where(y >= 0, y, alpha * y)       # PReLU (per-channel slope)
    o_ref[...] = y.astype(o_ref.dtype)


def _round_up(a, b):
    return ((a + b - 1) // b) * b


def _pick_tiles(NC, HW, itemsize, max_block_bytes):
    """Pick (row_tile, lane_tile) for the (N*C, H*W) view.

    Rows (N*C) live on sublanes, flattened spatial lives on lanes. Each tile dim is
    either a multiple of the hardware quantum (8/16 sublanes, 128 lanes) or equal to
    the full extent; a single in/out block is bounded by max_block_bytes.
    """
    LANE = 128
    SUB = 8 if itemsize >= 4 else (16 if itemsize == 2 else 32)
    max_elems = max(max_block_bytes // itemsize, SUB * LANE)

    # Lane (spatial) tile: prefer the full extent, otherwise a 128-multiple
    # (cdiv grid + padded tail handles HW % TW != 0; safe for elementwise).
    lane_cap = max(LANE, ((max_elems // SUB) // LANE) * LANE)
    TW = HW if HW <= lane_cap else lane_cap

    # Row tile: fill the remaining budget, multiple of SUB unless full extent.
    row_cap = max(SUB, ((max_elems // _round_up(TW, LANE)) // SUB) * SUB)
    R = NC if NC <= row_cap else row_cap

    # Keep at least two grid steps so both TensorCores on a v7x chip get work.
    if pl.cdiv(NC, R) * pl.cdiv(HW, TW) < 2:
        if TW % (2 * LANE) == 0:
            TW //= 2
        elif R % (2 * SUB) == 0:
            R //= 2
    return R, TW


def br_forward(x_nchw, gamma, beta, running_mean, running_var, prelu_alpha,
               eps=1e-5, training=False):
    """Matches BR.forward: BatchNorm2d(nOut) followed by PReLU(nOut), NCHW in/out.

    training=False uses running statistics (inference); training=True uses the
    batch statistics (biased variance), matching PyTorch's normalization math.
    """
    N, C, H, W = x_nchw.shape
    f32 = jnp.float32

    if training:
        # One fused pass over x: per-channel sum & sum-of-squares -> mean / biased var.
        # TODO(synk): running-stat (momentum) updates are training-state bookkeeping,
        # not part of the forward math; they are not produced here.
        xf = x_nchw.astype(f32)
        cnt = f32(N * H * W)
        s1 = jnp.sum(xf, axis=(0, 2, 3))
        s2 = jnp.sum(xf * xf, axis=(0, 2, 3))
        mean = s1 / cnt
        var = s2 / cnt - mean * mean
    else:
        mean = running_mean.astype(f32)
        var = running_var.astype(f32)

    inv = jax.lax.rsqrt(var + f32(eps))
    scale = gamma.astype(f32) * inv                       # (C,)
    shift = beta.astype(f32) - mean * scale               # (C,)
    alpha = prelu_alpha.astype(f32)                       # (C,)

    # Pack per-channel params and replicate over batch -> single (N*C, 3) input.
    params = jnp.tile(jnp.stack([scale, shift, alpha], axis=-1), (N, 1))

    NC, HW = N * C, H * W
    x2 = x_nchw.reshape(NC, HW)     # free reshape: rows on sublanes, spatial on lanes

    # Generation-aware VMEM budgeting (v7x: 64 MiB/TC, v5e/v6e: 128 MiB).
    itemsize = jnp.dtype(x_nchw.dtype).itemsize
    try:
        info = pltpu.get_tpu_info()
        vmem_cap = int(getattr(info, "vmem_capacity_bytes", 64 << 20))
    except Exception:
        vmem_cap = 64 << 20                    # conservative fallback (v7x per-core)
    vmem_limit = min(int(vmem_cap * 0.7), 64 << 20)
    # 2 double-buffered input blocks + 2 output blocks must fit with headroom.
    max_block_bytes = max(vmem_limit // 6, 256 * 1024)

    R, TW = _pick_tiles(NC, HW, itemsize, max_block_bytes)
    grid = (pl.cdiv(NC, R), pl.cdiv(HW, TW))

    out = pl.pallas_call(
        _br_kernel,
        out_shape=jax.ShapeDtypeStruct((NC, HW), x_nchw.dtype),
        grid=grid,
        in_specs=[
            pl.BlockSpec((R, TW), lambda i, j: (i, j)),
            pl.BlockSpec((R, 3), lambda i, j: (i, 0)),
        ],
        out_specs=pl.BlockSpec((R, TW), lambda i, j: (i, j)),
        compiler_params=pltpu.CompilerParams(
            dimension_semantics=("parallel", "parallel"),
            vmem_limit_bytes=vmem_limit),
    )(x2, params)

    return out.reshape(N, C, H, W)


def _reference_br(x, gamma, beta, mean, var, alpha, eps):
    inv = 1.0 / jnp.sqrt(var.astype(jnp.float32) + eps)
    s = (gamma * inv)[None, :, None, None]
    b = (beta - mean * gamma * inv)[None, :, None, None]
    y = x * s + b
    return jnp.where(y >= 0, y, alpha[None, :, None, None] * y)


if __name__ == "__main__":
    # BR(nOut=4) on a (2, 4, 16, 16) feature map.
    N, C, H, W = 2, 4, 16, 16
    eps = 1e-5

    key = jax.random.PRNGKey(0)
    kx, kg, kb, km, kv, ka = jax.random.split(key, 6)
    x = jax.random.normal(kx, (N, C, H, W), dtype=jnp.float32)
    gamma = jax.random.uniform(kg, (C,), minval=0.5, maxval=1.5, dtype=jnp.float32)
    beta = 0.1 * jax.random.normal(kb, (C,), dtype=jnp.float32)
    running_mean = 0.1 * jax.random.normal(km, (C,), dtype=jnp.float32)
    running_var = jax.random.uniform(kv, (C,), minval=0.5, maxval=1.5, dtype=jnp.float32)
    prelu_alpha = jax.random.uniform(ka, (C,), minval=0.1, maxval=0.3, dtype=jnp.float32)

    # Inference mode (running statistics).
    out = br_forward(x, gamma, beta, running_mean, running_var, prelu_alpha,
                     eps=eps, training=False)
    out = jax.block_until_ready(out)
    ref = _reference_br(x, gamma, beta, running_mean, running_var, prelu_alpha, eps)
    assert out.shape == ref.shape, (out.shape, ref.shape)
    assert jnp.allclose(out, ref, atol=1e-5, rtol=1e-5), "mismatch vs reference (eval mode)"

    # Training mode (batch statistics, biased variance).
    out_t = jax.block_until_ready(
        br_forward(x, gamma, beta, running_mean, running_var, prelu_alpha,
                   eps=eps, training=True))
    mean_b = jnp.mean(x, axis=(0, 2, 3))
    var_b = jnp.var(x, axis=(0, 2, 3))
    ref_t = _reference_br(x, gamma, beta, mean_b, var_b, prelu_alpha, eps)
    assert jnp.allclose(out_t, ref_t, atol=1e-4, rtol=1e-4), "mismatch vs reference (train mode)"

    print("KERNEL_OK")
</pallas_src>

<mosaic_0001>
module attributes {stable_mosaic.version = 11 : i64} {
  func.func @_br_kernel(%arg0: i32, %arg1: i32, %arg2: memref<8x128xf32, #tpu.memory_space<vmem>>, %arg3: memref<8x3xf32, #tpu.memory_space<vmem>>, %arg4: memref<8x128xf32, #tpu.memory_space<vmem>>) attributes {dimension_semantics = [#tpu.dimension_semantics<parallel>, #tpu.dimension_semantics<parallel>], iteration_bounds = array<i64: 1, 2>, scalar_prefetch = 0 : i64, scratch_operands = 0 : i64, tpu.core_type = #tpu.core_type<tc>, window_params = [{transform_indices = @transform_0, window_bounds = array<i64: 8, 128>}, {transform_indices = @transform_1, window_bounds = array<i64: 8, 3>}, {transform_indices = @transform_2, window_bounds = array<i64: 8, 128>}]} {
    %c0 = arith.constant 0 : index
    %c0_0 = arith.constant 0 : index
    %0 = vector.load %arg2[%c0, %c0_0] : memref<8x128xf32, #tpu.memory_space<vmem>>, vector<8x128xf32>
    %c0_1 = arith.constant 0 : index
    %c0_2 = arith.constant 0 : index
    %1 = vector.load %arg3[%c0_1, %c0_2] : memref<8x3xf32, #tpu.memory_space<vmem>>, vector<8x3xf32>
    %2 = vector.extract_strided_slice %1 {offsets = [0, 0], sizes = [8, 1], strides = [1, 1]} : vector<8x3xf32> to vector<8x1xf32>
    %3 = vector.extract_strided_slice %1 {offsets = [0, 1], sizes = [8, 1], strides = [1, 1]} : vector<8x3xf32> to vector<8x1xf32>
    %4 = vector.extract_strided_slice %1 {offsets = [0, 2], sizes = [8, 1], strides = [1, 1]} : vector<8x3xf32> to vector<8x1xf32>
    %5 = vector.broadcast %2 : vector<8x1xf32> to vector<8x128xf32>
    %6 = arith.mulf %0, %5 : vector<8x128xf32>
    %7 = vector.broadcast %3 : vector<8x1xf32> to vector<8x128xf32>
    %8 = arith.addf %6, %7 : vector<8x128xf32>
    %cst = arith.constant 0.000000e+00 : f32
    %9 = vector.broadcast %cst : f32 to vector<8x128xf32>
    %10 = arith.cmpf oge, %8, %9 : vector<8x128xf32>
    %11 = vector.broadcast %4 : vector<8x1xf32> to vector<8x128xf32>
    %12 = arith.mulf %11, %8 : vector<8x128xf32>
    %13 = arith.select %10, %8, %12 : vector<8x128xi1>, vector<8x128xf32>
    %c0_3 = arith.constant 0 : index
    %c0_4 = arith.constant 0 : index
    %14 = vector.load %arg4[%c0_3, %c0_4] : memref<8x128xf32, #tpu.memory_space<vmem>>, vector<8x128xf32>
    tpu.vector_store %arg4[%c0_3, %c0_4], %13 {strides = array<i32>} : memref<8x128xf32, #tpu.memory_space<vmem>>, vector<8x128xf32>,
    return
  }
  func.func @transform_0(%arg0: i32, %arg1: i32) -> (i32, i32) {
    %c0_i32 = arith.constant 0 : i32
    return %arg0, %arg1 : i32, i32
  }
  func.func @transform_1(%arg0: i32, %arg1: i32) -> (i32, i32) {
    %c0_i32 = arith.constant 0 : i32
    %c0_i32_0 = arith.constant 0 : i32
    return %arg0, %c0_i32 : i32, i32
  }
  func.func @transform_2(%arg0: i32, %arg1: i32) -> (i32, i32) {
    %c0_i32 = arith.constant 0 : i32
    return %arg0, %arg1 : i32, i32
  }
}

</mosaic_0001>

<llo_original>
// kernel: tpu_custom_call.1
$region0: #{tpu_custom_call.1}
  #allocation0 [shape = 'u32[]', space=smem, size = 0x4, offset = 0x4, fixed_abs, tag = 'smem constant byte address 0x4 - core index']
  #allocation1 [shape = 'u32[144,128]{1,0:T(1,128)}', space=vmem, size = 0x12000, scoped, tag = 'internal scratch']
  %s0 = inlined_call_operand.hbm [shape: f32[8,256], index: 0, kind: input, shape index: {}]
  %s1 = inlined_call_operand.vmem [shape: f32[8,3], index: 1, kind: input, shape index: {}]
  %s2 = inlined_call_operand.hbm [shape: f32[8,256], index: 2, kind: output, shape index: {}]
  %s3 = sld [smem:[#allocation0]]
  $region45: #{tpu_custom_call.1} parent=0
    _
  %s5 = ssub.s32 1, %s3
  %s6 = scalar_select 0, %s5, %s3
  $region1: #{tpu_custom_call.1} parent=0
    #allocation2 [shape = 'u8[8192]{0}', space=vmem, size = 0x2000, scoped, tag = 'input window, operand 0']
    #allocation3 [shape = 's32[2]{0}', space=sflag, size = 0x8, scoped, tag = 'scoped memory for tpu_custom_call.1']
    #allocation4 [shape = 's32[2]{0}', space=sflag, size = 0x8, scoped, tag = 'scoped memory for tpu_custom_call.1']
    #allocation5 [shape = 'u8[8192]{0}', space=vmem, size = 0x2000, scoped, tag = 'output window, operand 0']
    %7 = vsyncpa [#allocation3], 0
    %s8 = scalar_lea.sflag [#allocation3], 1
    %9 = vsyncpa %s8, 0
    %10 = vsyncpa [#allocation4], 0
    %s11 = scalar_lea.sflag [#allocation4], 1
    %12 = vsyncpa %s11, 0
    loop: start=0, step=1, limit=4
    $region2: #{tpu_custom_call.1} parent=1 // loop_pre_header
      _
    $region3: #{tpu_custom_call.1} parent=1 // loop_header
      %s14 = sphi 0, %s18
      %p15 = scmp.ge.s32.totalorder %s14, 4
      %s21 = sphi 0, %s33
      %s22 = sphi 0, %s29
      %s23 = sphi 0, %s21
      %s24 = sphi 0, %s22
      %s25 = sphi 0, %s23
      %s26 = sphi 0, %s24
      %s38 = sphi 0, %s40
      %s41 = sphi 0, %s38
      %s42 = sphi 0, %s41
      %s58 = sphi 0, %s42
      %s64 = sphi 0, %s66
      %s67 = sphi 0, %s64
      %s68 = sphi 0, %s67
      %s84 = sphi 0, %s68
      %s92 = sphi 0, %s94
      %s95 = sphi 0, %s92
      %s96 = sphi 0, %s95
      %s112 = sphi 0, %s96
    $region4: #{tpu_custom_call.1} parent=1 // loop_header_branch
      %17 = sbr.rel (%p15) target = $region8
    $region5: #{tpu_custom_call.1} parent=1 // loop_body
      %s19 = ssub.s32 %s14, 1
      %s20 = ssub.s32 %s14, 2
      %s27 = sadd.s32 1, %s22
      %p28 = scmp.ge.s32.totalorder %s27, 2
      %s29 = scalar_select %p28, 0, %s27
      %s30 = sadd.s32 1, %s21
      %s31 = scalar_select %p28, %s30, %s21
      %p32 = scmp.ge.s32.totalorder %s31, 1
      %s33 = scalar_select %p32, 0, %s31
      %s34 = ssub.s32 %s21, %s33
      %s35 = ssub.s32 %s22, %s29
      %s36 = sor.u32 %s34, %s35
      %p37 = scmp.eq.s32.totalorder %s36, 0
      %s39 = sadd.s32 %s38, 1
      %s40 = scalar_select %p37, %s38, %s39
      %p43 = pneg %p37
      %p44 = scmp.eq.s32.totalorder %s14, 1
      %p45 = por %p43, %p44
      %p46 = scmp.ne.s32.totalorder %s38, %s41
      %p47 = scmp.eq.s32.totalorder %s14, 0
      %p48 = por %p46, %p47
      %p49 = scmp.ne.s32.totalorder %s38, %s41
      %p50 = scmp.eq.s32.totalorder %s19, 1
      %p51 = por %p49, %p50
      %p52 = scmp.ne.s32.totalorder %s41, %s42
      %p53 = scmp.eq.s32.totalorder %s19, 0
      %p54 = por %p52, %p53
      %p55 = scmp.ne.s32.totalorder %s41, %s42
      %p56 = scmp.eq.s32.totalorder %s20, 1
      %p57 = por %p55, %p56
      %p59 = scmp.ne.s32.totalorder %s42, %s58
      %p60 = scmp.eq.s32.totalorder %s20, 0
      %p61 = por %p59, %p60
      %s62 = ssub.s32 %s21, %s33
      %p63 = scmp.eq.s32.totalorder %s62, 0
      %s65 = sadd.s32 %s64, 1
      %s66 = scalar_select %p63, %s64, %s65
      %p69 = pneg %p63
      %p70 = scmp.eq.s32.totalorder %s14, 1
      %p71 = por %p69, %p70
      %p72 = scmp.ne.s32.totalorder %s64, %s67
      %p73 = scmp.eq.s32.totalorder %s14, 0
      %p74 = por %p72, %p73
      %p75 = scmp.ne.s32.totalorder %s64, %s67
      %p76 = scmp.eq.s32.totalorder %s19, 1
      %p77 = por %p75, %p76
      %p78 = scmp.ne.s32.totalorder %s67, %s68
      %p79 = scmp.eq.s32.totalorder %s19, 0
      %p80 = por %p78, %p79
      %p81 = scmp.ne.s32.totalorder %s67, %s68
      %p82 = scmp.eq.s32.totalorder %s20, 1
      %p83 = por %p81, %p82
      %p85 = scmp.ne.s32.totalorder %s68, %s84
      %p86 = scmp.eq.s32.totalorder %s20, 0
      %p87 = por %p85, %p86
      %s88 = ssub.s32 %s21, %s33
      %s89 = ssub.s32 %s22, %s29
      %s90 = sor.u32 %s88, %s89
      %p91 = scmp.eq.s32.totalorder %s90, 0
      %s93 = sadd.s32 %s92, 1
      %s94 = scalar_select %p91, %s92, %s93
      %p97 = pneg %p91
      %p98 = scmp.eq.s32.totalorder %s14, 1
      %p99 = por %p97, %p98
      %p100 = scmp.ne.s32.totalorder %s92, %s95
      %p101 = scmp.eq.s32.totalorder %s14, 0
      %p102 = por %p100, %p101
      %p103 = scmp.ne.s32.totalorder %s92, %s95
      %p104 = scmp.eq.s32.totalorder %s19, 1
      %p105 = por %p103, %p104
      %p106 = scmp.ne.s32.totalorder %s95, %s96
      %p107 = scmp.eq.s32.totalorder %s19, 0
      %p108 = por %p106, %p107
      %p109 = scmp.ne.s32.totalorder %s95, %s96
      %p110 = scmp.eq.s32.totalorder %s20, 1
      %p111 = por %p109, %p110
      %p113 = scmp.ne.s32.totalorder %s96, %s112
      %p114 = scmp.eq.s32.totalorder %s20, 0
      %p115 = por %p113, %p114
      %p116 = scmp.le.s32.totalorder 1, %s14
      %p117 = scmp.lt.s32.totalorder %s14, 3
      %p118 = pnand %p116, %p117
      %p119 = pneg %p118
      // Predicated region
      $region9: #{tpu_custom_call.1} parent=5 // pred_check
        _
      $region10: #{tpu_custom_call.1} parent=5 // pred_check_branch
        %121 = sbr.rel (%p118) target = $region12
      $region11: #{tpu_custom_call.1} parent=5 // pred_region
        %s122 = ssub.s32 %s14, 1
        // Predicated region
        $region13: #{tpu_custom_call.1} parent=11 // pred_check
          %p123 = pneg %p80
        $region14: #{tpu_custom_call.1} parent=11 // pred_check_branch
          %125 = sbr.rel (%p123) target = $region16
        $region15: #{tpu_custom_call.1} parent=11 // pred_region
          %p126 = scmp.lt.s32.totalorder %s23, 0
          %s127 = scalar_select %p126, %s23, 0
          %s128 = smul.addr %s127, 8
          %s129 = scalar_lea.vmem %s1, %s128
        $region16: #{tpu_custom_call.1} parent=11 // pred_fallthru
          _
      $region12: #{tpu_custom_call.1} parent=5 // pred_fallthru
        _
      %p130 = scmp.lt.s32.totalorder %s14, 2
      // Predicated region
      $region17: #{tpu_custom_call.1} parent=5 // pred_check
        %p131 = pneg %p130
      $region18: #{tpu_custom_call.1} parent=5 // pred_check_branch
        %133 = sbr.rel (%p131) target = $region20
      $region19: #{tpu_custom_call.1} parent=5 // pred_region
        // Predicated region
        $region21: #{tpu_custom_call.1} parent=19 // pred_check
          %p134 = pneg %p48
        $region22: #{tpu_custom_call.1} parent=19 // pred_check_branch
          %136 = sbr.rel (%p134) target = $region24
        $region23: #{tpu_custom_call.1} parent=19 // pred_region
          %s137 = sand.u32 %s38, 1
          %s138 = scalar_lea.sflag [#allocation3], %s137
          %s139 = sand.u32 %s38, 1
          %s140 = smul.addr %s139, 8
          %s141 = scalar_lea.vmem [#allocation2], %s140
          %s143 = ssub.s32 128, 128
          %144 = vsyncadd %s138, %s143
          %s145 = smul.addr %s21, 2
          %s146 = sadd.s32 %s22, %s145
          %s147 = smul.addr %s146, 128
          %s148 = scalar_lea.hbm %s0, %s147
          %s150 = sshll.u32 %s141, 4
          %s151 = int_to_ptr.vmem [resolvable:$true] %s150
          %153 = dma.hbm_to_vmem [thread:$0]  %s148, 128, %s151, %s138
        $region24: #{tpu_custom_call.1} parent=19 // pred_fallthru
          _
      $region20: #{tpu_custom_call.1} parent=5 // pred_fallthru
        _
      %p154 = scmp.le.s32.totalorder 1, %s14
      %p155 = scmp.lt.s32.totalorder %s14, 3
      %p156 = pnand %p154, %p155
      %p157 = pneg %p156
      // Predicated region
      $region25: #{tpu_custom_call.1} parent=5 // pred_check
        _
      $region26: #{tpu_custom_call.1} parent=5 // pred_check_branch
        %159 = sbr.rel (%p156) target = $region28
      $region27: #{tpu_custom_call.1} parent=5 // pred_region
        %s160 = ssub.s32 %s14, 1
        %s161 = sand.u32 %s41, 1
        %s162 = scalar_lea.sflag [#allocation3], %s161
        %s163 = sand.u32 %s41, 1
        %s164 = smul.addr %s163, 8
        %s165 = scalar_lea.vmem [#allocation2], %s164
        // Predicated region
        $region29: #{tpu_custom_call.1} parent=27 // pred_check
          %p166 = pneg %p54
        $region30: #{tpu_custom_call.1} parent=27 // pred_check_branch
          %168 = sbr.rel (%p166) target = $region32
        $region31: #{tpu_custom_call.1} parent=27 // pred_region
          %169 = dma.done %s162, 128
        $region32: #{tpu_custom_call.1} parent=27 // pred_fallthru
          _
        %s170 = sand.u32 %s41, 1
        %s171 = scalar_lea.sflag [#allocation3], %s170
        %s172 = sand.u32 %s41, 1
        %s173 = smul.addr %s172, 8
        %s174 = scalar_lea.vmem [#allocation2], %s173
        %p175 = pneg %p54
        %p176 = pneg %p51
        %p177 = scmp.lt.s32.totalorder %s23, 0
        %s178 = scalar_select %p177, %s23, 0
        %s179 = smul.addr %s178, 8
        %s180 = scalar_lea.vmem %s1, %s179
        %p181 = pneg %p80
        %p182 = pneg %p77
        %p183 = pneg %p108
        %p184 = pneg %p105
        %s185 = sand.u32 %s95, 1
        %s186 = scalar_lea.sflag [#allocation4], %s185
        %s187 = sand.u32 %s95, 1
        %s188 = smul.addr %s187, 8
        %s189 = scalar_lea.vmem [#allocation5], %s188
        %p190 = scmp.lt.s32.totalorder %s23, 0
        %s191 = scalar_select %p190, %s23, 0
        %s192 = smul.addr %s191, 8
        %s193 = scalar_lea.vmem %s1, %s192
        %v194 = vld [vmem:[%s165] sm:$0xff]
        %v195 = vld [vmem:[%s193] sm:$0xff]
        %197 = vset.pattern.permute.xlu0 0
        %198 = vperm.xlu0 %197, %v195
        %v199 = vpop.permute.xlu0 %198
        %v201 = vmul.f32 %v194, %v199
        %202 = vset.pattern.permute.xlu0 1
        %203 = vperm.xlu0 %202, %v195
        %v204 = vpop.permute.xlu0 %203
        %v206 = vadd.f32 %v201, %v204
        %vm207 = vcmp.ge.f32.partialorder %v206, 0.0
        %208 = vset.pattern.permute.xlu0 2
        %209 = vperm.xlu0 %208, %v195
        %v210 = vpop.permute.xlu0 %209
        %v212 = vmul.f32 %v210, %v206
        %v213 = vsel %vm207, %v206, %v212
        %214 = vst [vmem:[%s189] sm:$0xff] %v213
        %s215 = sand.u32 %s95, 1
        %s216 = scalar_lea.sflag [#allocation4], %s215
        %s217 = sand.u32 %s95, 1
        %s218 = smul.addr %s217, 8
        %s219 = scalar_lea.vmem [#allocation5], %s218
        // Predicated region
        $region33: #{tpu_custom_call.1} parent=27 // pred_check
          %p220 = pneg %p105
        $region34: #{tpu_custom_call.1} parent=27 // pred_check_branch
          %222 = sbr.rel (%p220) target = $region36
        $region35: #{tpu_custom_call.1} parent=27 // pred_region
          %s224 = ssub.s32 128, 128
          %225 = vsyncadd %s216, %s224
          %s226 = smul.addr %s23, 2
          %s227 = sadd.s32 %s24, %s226
          %s228 = smul.addr %s227, 128
          %s229 = scalar_lea.hbm %s2, %s228
          %s231 = sshll.u32 %s219, 4
          %s232 = int_to_ptr.vmem [resolvable:$true] %s231
          %234 = dma.vmem_to_hbm [thread:$0]  %s232, 128, %s229, %s216
        $region36: #{tpu_custom_call.1} parent=27 // pred_fallthru
          _
      $region28: #{tpu_custom_call.1} parent=5 // pred_fallthru
        _
      %p235 = scmp.le.s32.totalorder 2, %s14
      // Predicated region
      $region37: #{tpu_custom_call.1} parent=5 // pred_check
        %p236 = pneg %p235
      $region38: #{tpu_custom_call.1} parent=5 // pred_check_branch
        %238 = sbr.rel (%p236) target = $region40
      $region39: #{tpu_custom_call.1} parent=5 // pred_region
        %s239 = ssub.s32 %s14, 2
        // Predicated region
        $region41: #{tpu_custom_call.1} parent=39 // pred_check
          %p240 = pneg %p111
        $region42: #{tpu_custom_call.1} parent=39 // pred_check_branch
          %242 = sbr.rel (%p240) target = $region44
        $region43: #{tpu_custom_call.1} parent=39 // pred_region
          %s243 = sand.u32 %s96, 1
          %s244 = scalar_lea.sflag [#allocation4], %s243
          %s245 = sand.u32 %s96, 1
          %s246 = smul.addr %s245, 8
          %s247 = scalar_lea.vmem [#allocation5], %s246
          %248 = dma.done %s244, 128
        $region44: #{tpu_custom_call.1} parent=39 // pred_fallthru
          _
      $region40: #{tpu_custom_call.1} parent=5 // pred_fallthru
        _
    $region6: #{tpu_custom_call.1} parent=1 // loop_footer
      %s18 = sadd.s32 1, %s14
    $region7: #{tpu_custom_call.1} parent=1 // loop_footer_branch
      %13 = sbr.rel target = $region3
    $region8: #{tpu_custom_call.1} parent=1 // loop_exit
      _
    %249 = vsyncpa [#allocation3], 1
    %s250 = scalar_lea.sflag [#allocation3], 1
    %251 = vsyncpa %s250, 1
    %252 = vsyncpa [#allocation4], 1
    %s253 = scalar_lea.sflag [#allocation4], 1
    %254 = vsyncpa %s253, 1

</llo_original>
